<compile_context>
chip_gen: v7x
topology: tpu7x:2x2x1
jax: 0.10.0
libtpu: 0.0.40
codegen_flags: <defaults>
</compile_context>

<pallas_src>
import jax
import jax.numpy as jnp
from jax.experimental import pallas as pl
from jax.experimental.pallas import tpu as pltpu

_LANE = 128
_SMALL_BYTES = 256 * 1024


def _linreg_kernel(w_ref, b_ref, x_ref, o_ref):
    # w_ref/b_ref: (1, 1) f32 scalars in SMEM; x_ref/o_ref: (row_tile, d) tiles in VMEM.
    x = x_ref[...]
    if jnp.issubdtype(x.dtype, jnp.floating):
        cdt = x.dtype      # bf16/fp8 stay narrow (halves vreg pressure); f32 stays f32
    else:
        cdt = jnp.float32
    w = w_ref[0, 0].astype(cdt)
    b = b_ref[0, 0].astype(cdt)
    o_ref[...] = (w * x.astype(cdt) + b).astype(o_ref.dtype)


def _phys_vmem_bytes():
    try:
        v = getattr(pltpu.get_tpu_info(), "vmem_capacity_bytes", None)
        if v:
            return int(v)
    except Exception:
        pass
    return 64 * 1024 * 1024          # conservative fallback (v7x per-TC VMEM)


def _tiled_call(slab, w2, b2, row_tile, vmem_limit):
    rows, d = slab.shape
    grid = pl.cdiv(rows, row_tile)
    return pl.pallas_call(
        _linreg_kernel,
        out_shape=jax.ShapeDtypeStruct((rows, d), slab.dtype),
        grid_spec=pltpu.PrefetchScalarGridSpec(
            num_scalar_prefetch=0,
            grid=(grid,),
            in_specs=[
                pl.BlockSpec(memory_space=pltpu.MemorySpace.SMEM),   # weights (1,1)
                pl.BlockSpec(memory_space=pltpu.MemorySpace.SMEM),   # bias    (1,1)
                pl.BlockSpec((row_tile, d), lambda i: (i, 0)),       # x tile
            ],
            out_specs=pl.BlockSpec((row_tile, d), lambda i: (i, 0)),  # y tile
        ),
        compiler_params=pltpu.CompilerParams(
            dimension_semantics=("parallel",),
            vmem_limit_bytes=int(vmem_limit),
        ),
    )(w2, b2, slab)


def linear_regression_forward(x, weights, bias, *, tm=None):
    """y = weights * x + bias (scalar weights/bias broadcast over x of any shape)."""
    orig_shape = x.shape
    dtype = x.dtype
    itemsize = jnp.dtype(dtype).itemsize
    w32 = jnp.asarray(weights, jnp.float32).reshape(())
    b32 = jnp.asarray(bias, jnp.float32).reshape(())

    def _jnp_affine(v):
        return (w32 * v.astype(jnp.float32) + b32).astype(dtype)

    total = int(x.size)
    # Tiny inputs: kernel launch + DMA setup dominate; let XLA fuse the trivial FMA.
    if total * itemsize < _SMALL_BYTES:
        return _jnp_affine(x)

    phys_vmem = _phys_vmem_bytes()
    # Double-buffered pipeline holds 2x in + 2x out = 4x tile; keep that <= ~40% of
    # physical VMEM (v7x: 64 MiB/TC -> ~6.4 MiB tiles; v5e/v6e capped at 8 MiB).
    budget = int(min(8 * 1024 * 1024, max(2 * 1024 * 1024, phys_vmem // 10)))

    # Build a lane-dense 2-D slab without any padding passes through HBM.
    tail = None
    if x.ndim >= 2 and x.shape[-1] % _LANE == 0 and x.shape[-1] * itemsize <= budget:
        slab = x.reshape(-1, x.shape[-1])
    elif total % _LANE == 0:
        slab = x.reshape(-1, _LANE)                      # free reshape, no pad
    else:
        flat = x.reshape(-1)
        aligned = (total // _LANE) * _LANE
        slab = flat[:aligned].reshape(-1, _LANE)         # kernel on the aligned prefix
        tail = flat[aligned:]                            # <=127-element tail via jnp

    rows, d = slab.shape
    # Sublane packing: f32 -> 8 rows/vreg, bf16 -> 16, int8/fp8 -> 32.
    sublane = max(8, 32 // max(itemsize, 1))

    # Row tile derived purely from the byte budget (tm is an explicit override only).
    row_tile = max(sublane, (budget // (d * itemsize)) // sublane * sublane)
    if tm is not None:
        row_tile = min(row_tile, max(sublane, (tm // sublane) * sublane))
    row_tile = min(row_tile, rows)
    # Ensure >= 2 grid steps so v7x's two TensorCores both get work (no-op elsewhere).
    if row_tile >= rows and rows >= 2 * sublane:
        half = (rows + 1) // 2
        row_tile = ((half + sublane - 1) // sublane) * sublane

    tile_bytes = row_tile * d * itemsize
    vmem_limit = max(16 * 1024 * 1024, 4 * tile_bytes + 8 * 1024 * 1024)
    vmem_limit = min(vmem_limit, phys_vmem - 8 * 1024 * 1024)

    out = _tiled_call(slab, w32.reshape(1, 1), b32.reshape(1, 1), row_tile, vmem_limit)

    if tail is None:
        return out.reshape(orig_shape)
    # TODO(synk): the tail concat costs one extra HBM pass; a masked pltpu.store of the
    # ragged final lanes inside the kernel would remove it.
    return jnp.concatenate([out.reshape(-1), _jnp_affine(tail)]).reshape(orig_shape)


if __name__ == "__main__":
    key = jax.random.PRNGKey(0)
    kw, kb, k1, k2, k3, k4, k5, k6 = jax.random.split(key, 8)

    # Parameters (module __init__: torch.randn(1) each).
    weights = jax.random.normal(kw, (1,), dtype=jnp.float32)
    bias = jax.random.normal(kb, (1,), dtype=jnp.float32)

    def ref(v):
        return weights[0] * v + bias[0]

    # 1) Lane-friendly input that goes through the Pallas kernel (2 parallel grid steps).
    x1 = jax.random.normal(k1, (2048, 256), dtype=jnp.float32)
    y1 = linear_regression_forward(x1, weights, bias)
    jax.block_until_ready(y1)
    assert jnp.allclose(y1, ref(x1), atol=1e-6), "mismatch (lane-friendly kernel path)"

    # 2) Ragged row count (masked writeback on the last block).
    x2 = jax.random.normal(k2, (1000, 128), dtype=jnp.float32)
    y2 = linear_regression_forward(x2, weights, bias)
    assert jnp.allclose(y2, ref(x2), atol=1e-6), "mismatch (ragged rows)"

    # 3) Typical linear-regression shape: tiny -> short-circuits to plain jnp.
    x3 = jax.random.normal(k3, (32, 1), dtype=jnp.float32)
    y3 = linear_regression_forward(x3, weights, bias)
    assert jnp.allclose(y3, ref(x3), atol=1e-6), "mismatch (tiny short-circuit)"

    # 4) Small odd shape -> short-circuit path.
    x4 = jax.random.normal(k4, (5, 7, 9), dtype=jnp.float32)
    y4 = linear_regression_forward(x4, weights, bias)
    assert jnp.allclose(y4, ref(x4), atol=1e-6), "mismatch (small odd shape)"

    # 5) Large non-128-aligned size -> kernel on aligned prefix + jnp tail (no pad/slice).
    x5 = jax.random.normal(k5, (3000, 130), dtype=jnp.float32)
    y5 = linear_regression_forward(x5, weights, bias)
    assert jnp.allclose(y5, ref(x5), atol=1e-6), "mismatch (prefix + tail)"

    # 6) Last dim not lane-aligned but total is -> free flat reshape path.
    x6 = jax.random.normal(k6, (1024, 96), dtype=jnp.float32)
    y6 = linear_regression_forward(x6, weights, bias)
    assert jnp.allclose(y6, ref(x6), atol=1e-6), "mismatch (flat reshape path)"

    jax.block_until_ready((y2, y3, y4, y5, y6))
    print("KERNEL_OK")
</pallas_src>

<mosaic_0001>
module attributes {stable_mosaic.version = 11 : i64} {
  func.func @_linreg_kernel(%arg0: i32, %arg1: memref<1x1xf32, #tpu.memory_space<smem>>, %arg2: memref<1x1xf32, #tpu.memory_space<smem>>, %arg3: memref<1024x256xf32, #tpu.memory_space<vmem>>, %arg4: memref<1024x256xf32, #tpu.memory_space<vmem>>) attributes {dimension_semantics = [#tpu.dimension_semantics<parallel>], iteration_bounds = array<i64: 2>, scalar_prefetch = 0 : i64, scratch_operands = 0 : i64, tpu.core_type = #tpu.core_type<tc>, window_params = [{transform_indices = @transform_0, window_bounds = array<i64: 1, 1>}, {transform_indices = @transform_1, window_bounds = array<i64: 1, 1>}, {transform_indices = @transform_2, window_bounds = array<i64: 1024, 256>}, {transform_indices = @transform_3, window_bounds = array<i64: 1024, 256>}]} {
    %c0 = arith.constant 0 : index
    %c0_0 = arith.constant 0 : index
    %0 = vector.load %arg3[%c0, %c0_0] : memref<1024x256xf32, #tpu.memory_space<vmem>>, vector<1024x256xf32>
    %c0_1 = arith.constant 0 : index
    %c0_2 = arith.constant 0 : index
    %1 = memref.load %arg1[%c0_1, %c0_2] : memref<1x1xf32, #tpu.memory_space<smem>>
    %c0_3 = arith.constant 0 : index
    %c0_4 = arith.constant 0 : index
    %2 = memref.load %arg2[%c0_3, %c0_4] : memref<1x1xf32, #tpu.memory_space<smem>>
    %3 = vector.broadcast %1 : f32 to vector<1024x256xf32>
    %4 = arith.mulf %3, %0 : vector<1024x256xf32>
    %5 = vector.broadcast %2 : f32 to vector<1024x256xf32>
    %6 = arith.addf %4, %5 : vector<1024x256xf32>
    %c0_5 = arith.constant 0 : index
    %c0_6 = arith.constant 0 : index
    %7 = vector.load %arg4[%c0_5, %c0_6] : memref<1024x256xf32, #tpu.memory_space<vmem>>, vector<1024x256xf32>
    tpu.vector_store %arg4[%c0_5, %c0_6], %6 {strides = array<i32>} : memref<1024x256xf32, #tpu.memory_space<vmem>>, vector<1024x256xf32>,
    return
  }
  func.func @transform_0(%arg0: i32) -> (i32, i32) {
    %c0_i32 = arith.constant 0 : i32
    %c0_i32_0 = arith.constant 0 : i32
    %c0_i32_1 = arith.constant 0 : i32
    return %c0_i32, %c0_i32_0 : i32, i32
  }
  func.func @transform_1(%arg0: i32) -> (i32, i32) {
    %c0_i32 = arith.constant 0 : i32
    %c0_i32_0 = arith.constant 0 : i32
    %c0_i32_1 = arith.constant 0 : i32
    return %c0_i32, %c0_i32_0 : i32, i32
  }
  func.func @transform_2(%arg0: i32) -> (i32, i32) {
    %c0_i32 = arith.constant 0 : i32
    %c0_i32_0 = arith.constant 0 : i32
    return %arg0, %c0_i32 : i32, i32
  }
  func.func @transform_3(%arg0: i32) -> (i32, i32) {
    %c0_i32 = arith.constant 0 : i32
    %c0_i32_0 = arith.constant 0 : i32
    return %arg0, %c0_i32 : i32, i32
  }
}

</mosaic_0001>

<llo_original>
// kernel: tpu_custom_call.1
$region0: #{tpu_custom_call.1}
  #allocation0 [shape = 'u32[]', space=smem, size = 0x4, offset = 0x4, fixed_abs, tag = 'smem constant byte address 0x4 - core index']
  #allocation1 [shape = 'u32[144,128]{1,0:T(1,128)}', space=vmem, size = 0x12000, scoped, tag = 'internal scratch']
  #allocation2 [shape = 'f32[1,1]{1,0:T(1,128)S(6)}', space=smem, size = 0x200, scoped, tag = 'scoped memory for tpu_custom_call.1']
  #allocation3 [shape = 'f32[1,1]{1,0:T(1,128)S(6)}', space=smem, size = 0x200, scoped, tag = 'scoped memory for tpu_custom_call.1']
  %s0 = inlined_call_operand.<no memory space> [shape: f32[1,1], index: 0, kind: input, shape index: {}]
  %s1 = inlined_call_operand.<no memory space> [shape: f32[1,1], index: 1, kind: input, shape index: {}]
  %s2 = inlined_call_operand.hbm [shape: f32[2048,256], index: 2, kind: input, shape index: {}]
  %s3 = inlined_call_operand.hbm [shape: f32[2048,256], index: 3, kind: output, shape index: {}]
  %s4 = sld [smem:[#allocation0]]
  $region49: #{tpu_custom_call.1} parent=0
    _
  %s6 = ssub.s32 1, %s4
  %s7 = scalar_select 0, %s6, %s4
  %8 = sst [smem:[#allocation2]] %s0
  %9 = sst [smem:[#allocation3]] %s1
  $region1: #{tpu_custom_call.1} parent=0
    #allocation4 [shape = 'u8[2097152]{0}', space=vmem, size = 0x200000, scoped, tag = 'input window, operand 2']
    #allocation5 [shape = 's32[2]{0}', space=sflag, size = 0x8, scoped, tag = 'scoped memory for tpu_custom_call.1']
    #allocation6 [shape = 's32[2]{0}', space=sflag, size = 0x8, scoped, tag = 'scoped memory for tpu_custom_call.1']
    #allocation7 [shape = 'u8[2097152]{0}', space=vmem, size = 0x200000, scoped, tag = 'output window, operand 0']
    %10 = vsyncpa [#allocation5], 0
    %s11 = scalar_lea.sflag [#allocation5], 1
    %12 = vsyncpa %s11, 0
    %13 = vsyncpa [#allocation6], 0
    %s14 = scalar_lea.sflag [#allocation6], 1
    %15 = vsyncpa %s14, 0
    loop: start=0, step=1, limit=4
    $region2: #{tpu_custom_call.1} parent=1 // loop_pre_header
      _
    $region3: #{tpu_custom_call.1} parent=1 // loop_header
      %s17 = sphi 0, %s21
      %p18 = scmp.ge.s32.totalorder %s17, 4
      %s25 = sphi 0, %s25
      %s27 = sphi 0, %s25
      %s28 = sphi 0, %s27
      %s42 = sphi 0, %s28
      %s46 = sphi 0, %s46
      %s48 = sphi 0, %s46
      %s49 = sphi 0, %s48
      %s63 = sphi 0, %s49
      %s69 = sphi 0, %s71
      %s72 = sphi 0, %s69
      %s73 = sphi 0, %s72
      %s89 = sphi 0, %s73
      %s95 = sphi 0, %s97
      %s98 = sphi 0, %s95
      %s99 = sphi 0, %s98
      %s115 = sphi 0, %s99
    $region4: #{tpu_custom_call.1} parent=1 // loop_header_branch
      %20 = sbr.rel (%p18) target = $region8
    $region5: #{tpu_custom_call.1} parent=1 // loop_body
      %s22 = ssub.s32 %s17, 1
      %s23 = ssub.s32 %s17, 2
      %s24 = sadd.s32 %s17, 1
      %s26 = sadd.s32 %s25, 1
      %p29 = scmp.eq.s32.totalorder %s17, 1
      %p30 = scmp.ne.s32.totalorder %s25, %s27
      %p31 = scmp.eq.s32.totalorder %s17, 0
      %p32 = por %p30, %p31
      %p33 = scmp.ne.s32.totalorder %s25, %s27
      %p34 = scmp.eq.s32.totalorder %s22, 1
      %p35 = por %p33, %p34
      %p36 = scmp.ne.s32.totalorder %s27, %s28
      %p37 = scmp.eq.s32.totalorder %s22, 0
      %p38 = por %p36, %p37
      %p39 = scmp.ne.s32.totalorder %s27, %s28
      %p40 = scmp.eq.s32.totalorder %s23, 1
      %p41 = por %p39, %p40
      %p43 = scmp.ne.s32.totalorder %s28, %s42
      %p44 = scmp.eq.s32.totalorder %s23, 0
      %p45 = por %p43, %p44
      %s47 = sadd.s32 %s46, 1
      %p50 = scmp.eq.s32.totalorder %s17, 1
      %p51 = scmp.ne.s32.totalorder %s46, %s48
      %p52 = scmp.eq.s32.totalorder %s17, 0
      %p53 = por %p51, %p52
      %p54 = scmp.ne.s32.totalorder %s46, %s48
      %p55 = scmp.eq.s32.totalorder %s22, 1
      %p56 = por %p54, %p55
      %p57 = scmp.ne.s32.totalorder %s48, %s49
      %p58 = scmp.eq.s32.totalorder %s22, 0
      %p59 = por %p57, %p58
      %p60 = scmp.ne.s32.totalorder %s48, %s49
      %p61 = scmp.eq.s32.totalorder %s23, 1
      %p62 = por %p60, %p61
      %p64 = scmp.ne.s32.totalorder %s49, %s63
      %p65 = scmp.eq.s32.totalorder %s23, 0
      %p66 = por %p64, %p65
      %s67 = ssub.s32 %s17, %s24
      %p68 = scmp.eq.s32.totalorder %s67, 0
      %s70 = sadd.s32 %s69, 1
      %s71 = scalar_select %p68, %s69, %s70
      %p74 = pneg %p68
      %p75 = scmp.eq.s32.totalorder %s17, 1
      %p76 = por %p74, %p75
      %p77 = scmp.ne.s32.totalorder %s69, %s72
      %p78 = scmp.eq.s32.totalorder %s17, 0
      %p79 = por %p77, %p78
      %p80 = scmp.ne.s32.totalorder %s69, %s72
      %p81 = scmp.eq.s32.totalorder %s22, 1
      %p82 = por %p80, %p81
      %p83 = scmp.ne.s32.totalorder %s72, %s73
      %p84 = scmp.eq.s32.totalorder %s22, 0
      %p85 = por %p83, %p84
      %p86 = scmp.ne.s32.totalorder %s72, %s73
      %p87 = scmp.eq.s32.totalorder %s23, 1
      %p88 = por %p86, %p87
      %p90 = scmp.ne.s32.totalorder %s73, %s89
      %p91 = scmp.eq.s32.totalorder %s23, 0
      %p92 = por %p90, %p91
      %s93 = ssub.s32 %s17, %s24
      %p94 = scmp.eq.s32.totalorder %s93, 0
      %s96 = sadd.s32 %s95, 1
      %s97 = scalar_select %p94, %s95, %s96
      %p100 = pneg %p94
      %p101 = scmp.eq.s32.totalorder %s17, 1
      %p102 = por %p100, %p101
      %p103 = scmp.ne.s32.totalorder %s95, %s98
      %p104 = scmp.eq.s32.totalorder %s17, 0
      %p105 = por %p103, %p104
      %p106 = scmp.ne.s32.totalorder %s95, %s98
      %p107 = scmp.eq.s32.totalorder %s22, 1
      %p108 = por %p106, %p107
      %p109 = scmp.ne.s32.totalorder %s98, %s99
      %p110 = scmp.eq.s32.totalorder %s22, 0
      %p111 = por %p109, %p110
      %p112 = scmp.ne.s32.totalorder %s98, %s99
      %p113 = scmp.eq.s32.totalorder %s23, 1
      %p114 = por %p112, %p113
      %p116 = scmp.ne.s32.totalorder %s99, %s115
      %p117 = scmp.eq.s32.totalorder %s23, 0
      %p118 = por %p116, %p117
      %p119 = scmp.le.s32.totalorder 1, %s17
      %p120 = scmp.lt.s32.totalorder %s17, 3
      %p121 = pnand %p119, %p120
      %p122 = pneg %p121
      // Predicated region
      $region9: #{tpu_custom_call.1} parent=5 // pred_check
        _
      $region10: #{tpu_custom_call.1} parent=5 // pred_check_branch
        %124 = sbr.rel (%p121) target = $region12
      $region11: #{tpu_custom_call.1} parent=5 // pred_region
        %s125 = ssub.s32 %s17, 1
        // Predicated region
        $region13: #{tpu_custom_call.1} parent=11 // pred_check
          %p126 = pneg %p38
        $region14: #{tpu_custom_call.1} parent=11 // pred_check_branch
          %128 = sbr.rel (%p126) target = $region16
        $region15: #{tpu_custom_call.1} parent=11 // pred_region
          _
        $region16: #{tpu_custom_call.1} parent=11 // pred_fallthru
          _
        // Predicated region
        $region17: #{tpu_custom_call.1} parent=11 // pred_check
          %p129 = pneg %p59
        $region18: #{tpu_custom_call.1} parent=11 // pred_check_branch
          %131 = sbr.rel (%p129) target = $region20
        $region19: #{tpu_custom_call.1} parent=11 // pred_region
          _
        $region20: #{tpu_custom_call.1} parent=11 // pred_fallthru
          _
      $region12: #{tpu_custom_call.1} parent=5 // pred_fallthru
        _
      %p132 = scmp.lt.s32.totalorder %s17, 2
      // Predicated region
      $region21: #{tpu_custom_call.1} parent=5 // pred_check
        %p133 = pneg %p132
      $region22: #{tpu_custom_call.1} parent=5 // pred_check_branch
        %135 = sbr.rel (%p133) target = $region24
      $region23: #{tpu_custom_call.1} parent=5 // pred_region
        // Predicated region
        $region25: #{tpu_custom_call.1} parent=23 // pred_check
          %p136 = pneg %p79
        $region26: #{tpu_custom_call.1} parent=23 // pred_check_branch
          %138 = sbr.rel (%p136) target = $region28
        $region27: #{tpu_custom_call.1} parent=23 // pred_region
          %s139 = sand.u32 %s69, 1
          %s140 = scalar_lea.sflag [#allocation5], %s139
          %s141 = sand.u32 %s69, 1
          %s142 = smul.addr %s141, 2048
          %s143 = scalar_lea.vmem [#allocation4], %s142
          %s144 = smul.u32 128, %s17
          %s146 = ssub.s32 32768, 32768
          %147 = vsyncadd %s140, %s146
          %s148 = smul.addr %s144, 2
          %s149 = smul.addr %s148, 128
          %s150 = scalar_lea.hbm %s2, %s149
          %s151 = sshll.u32 %s143, 4
          %s152 = int_to_ptr.vmem [resolvable:$true] %s151
          %157 = dma.hbm_to_vmem [thread:$0]  %s150, 32768, %s152, %s140, 256, 256, 16
        $region28: #{tpu_custom_call.1} parent=23 // pred_fallthru
          _
      $region24: #{tpu_custom_call.1} parent=5 // pred_fallthru
        _
      %p158 = scmp.le.s32.totalorder 1, %s17
      %p159 = scmp.lt.s32.totalorder %s17, 3
      %p160 = pnand %p158, %p159
      %p161 = pneg %p160
      // Predicated region
      $region29: #{tpu_custom_call.1} parent=5 // pred_check
        _
      $region30: #{tpu_custom_call.1} parent=5 // pred_check_branch
        %163 = sbr.rel (%p160) target = $region32
      $region31: #{tpu_custom_call.1} parent=5 // pred_region
        %s164 = ssub.s32 %s17, 1
        %s165 = sand.u32 %s72, 1
        %s166 = scalar_lea.sflag [#allocation5], %s165
        %s167 = sand.u32 %s72, 1
        %s168 = smul.addr %s167, 2048
        %s169 = scalar_lea.vmem [#allocation4], %s168
        // Predicated region
        $region33: #{tpu_custom_call.1} parent=31 // pred_check
          %p170 = pneg %p85
        $region34: #{tpu_custom_call.1} parent=31 // pred_check_branch
          %172 = sbr.rel (%p170) target = $region36
        $region35: #{tpu_custom_call.1} parent=31 // pred_region
          %173 = dma.done %s166, 32768
        $region36: #{tpu_custom_call.1} parent=31 // pred_fallthru
          _
        %p174 = pneg %p38
        %p175 = pneg %p35
        %p176 = pneg %p59
        %p177 = pneg %p56
        %s178 = sand.u32 %s72, 1
        %s179 = scalar_lea.sflag [#allocation5], %s178
        %s180 = sand.u32 %s72, 1
        %s181 = smul.addr %s180, 2048
        %s182 = scalar_lea.vmem [#allocation4], %s181
        %p183 = pneg %p85
        %p184 = pneg %p82
        %p185 = pneg %p111
        %p186 = pneg %p108
        %s187 = sand.u32 %s98, 1
        %s188 = scalar_lea.sflag [#allocation6], %s187
        %s189 = sand.u32 %s98, 1
        %s190 = smul.addr %s189, 2048
        %s191 = scalar_lea.vmem [#allocation7], %s190
        %s192 = smul.u32 128, %s22
        %s193 = smul.u32 128, %s22
        %v194 = vld [vmem:[%s169] sm:$0xff]
        %v195 = vld [vmem:[%s169 + $0x8] sm:$0xff]
        %v196 = vld [vmem:[%s169 + $0x10] sm:$0xff]
        %v197 = vld [vmem:[%s169 + $0x18] sm:$0xff]
        %v198 = vld [vmem:[%s169 + $0x20] sm:$0xff]
        %v199 = vld [vmem:[%s169 + $0x28] sm:$0xff]
        %v200 = vld [vmem:[%s169 + $0x30] sm:$0xff]
        %v201 = vld [vmem:[%s169 + $0x38] sm:$0xff]
        %v202 = vld [vmem:[%s169 + $0x40] sm:$0xff]
        %v203 = vld [vmem:[%s169 + $0x48] sm:$0xff]
        %v204 = vld [vmem:[%s169 + $0x50] sm:$0xff]
        %v205 = vld [vmem:[%s169 + $0x58] sm:$0xff]
        %v206 = vld [vmem:[%s169 + $0x60] sm:$0xff]
        %v207 = vld [vmem:[%s169 + $0x68] sm:$0xff]
        %v208 = vld [vmem:[%s169 + $0x70] sm:$0xff]
        %v209 = vld [vmem:[%s169 + $0x78] sm:$0xff]
        %v210 = vld [vmem:[%s169 + $0x80] sm:$0xff]
        %v211 = vld [vmem:[%s169 + $0x88] sm:$0xff]
        %v212 = vld [vmem:[%s169 + $0x90] sm:$0xff]
        %v213 = vld [vmem:[%s169 + $0x98] sm:$0xff]
        %v214 = vld [vmem:[%s169 + $0xa0] sm:$0xff]
        %v215 = vld [vmem:[%s169 + $0xa8] sm:$0xff]
        %v216 = vld [vmem:[%s169 + $0xb0] sm:$0xff]
        %v217 = vld [vmem:[%s169 + $0xb8] sm:$0xff]
        %v218 = vld [vmem:[%s169 + $0xc0] sm:$0xff]
        %v219 = vld [vmem:[%s169 + $0xc8] sm:$0xff]
        %v220 = vld [vmem:[%s169 + $0xd0] sm:$0xff]
        %v221 = vld [vmem:[%s169 + $0xd8] sm:$0xff]
        %v222 = vld [vmem:[%s169 + $0xe0] sm:$0xff]
        %v223 = vld [vmem:[%s169 + $0xe8] sm:$0xff]
        %v224 = vld [vmem:[%s169 + $0xf0] sm:$0xff]
        %v225 = vld [vmem:[%s169 + $0xf8] sm:$0xff]
        %v226 = vld [vmem:[%s169 + $0x100] sm:$0xff]
        %v227 = vld [vmem:[%s169 + $0x108] sm:$0xff]
        %v228 = vld [vmem:[%s169 + $0x110] sm:$0xff]
        %v229 = vld [vmem:[%s169 + $0x118] sm:$0xff]
        %v230 = vld [vmem:[%s169 + $0x120] sm:$0xff]
        %v231 = vld [vmem:[%s169 + $0x128] sm:$0xff]
        %v232 = vld [vmem:[%s169 + $0x130] sm:$0xff]
        %v233 = vld [vmem:[%s169 + $0x138] sm:$0xff]
        %v234 = vld [vmem:[%s169 + $0x140] sm:$0xff]
        %v235 = vld [vmem:[%s169 + $0x148] sm:$0xff]
        %v236 = vld [vmem:[%s169 + $0x150] sm:$0xff]
        %v237 = vld [vmem:[%s169 + $0x158] sm:$0xff]
        %v238 = vld [vmem:[%s169 + $0x160] sm:$0xff]
        %v239 = vld [vmem:[%s169 + $0x168] sm:$0xff]
        %v240 = vld [vmem:[%s169 + $0x170] sm:$0xff]
        %v241 = vld [vmem:[%s169 + $0x178] sm:$0xff]
        %v242 = vld [vmem:[%s169 + $0x180] sm:$0xff]
        %v243 = vld [vmem:[%s169 + $0x188] sm:$0xff]
        %v244 = vld [vmem:[%s169 + $0x190] sm:$0xff]
        %v245 = vld [vmem:[%s169 + $0x198] sm:$0xff]
        %v246 = vld [vmem:[%s169 + $0x1a0] sm:$0xff]
        %v247 = vld [vmem:[%s169 + $0x1a8] sm:$0xff]
        %v248 = vld [vmem:[%s169 + $0x1b0] sm:$0xff]
        %v249 = vld [vmem:[%s169 + $0x1b8] sm:$0xff]
        %v250 = vld [vmem:[%s169 + $0x1c0] sm:$0xff]
        %v251 = vld [vmem:[%s169 + $0x1c8] sm:$0xff]
        %v252 = vld [vmem:[%s169 + $0x1d0] sm:$0xff]
        %v253 = vld [vmem:[%s169 + $0x1d8] sm:$0xff]
        %v254 = vld [vmem:[%s169 + $0x1e0] sm:$0xff]
        %v255 = vld [vmem:[%s169 + $0x1e8] sm:$0xff]
        %v256 = vld [vmem:[%s169 + $0x1f0] sm:$0xff]
        %v257 = vld [vmem:[%s169 + $0x1f8] sm:$0xff]
        %v258 = vld [vmem:[%s169 + $0x200] sm:$0xff]
        %v259 = vld [vmem:[%s169 + $0x208] sm:$0xff]
        %v260 = vld [vmem:[%s169 + $0x210] sm:$0xff]
        %v261 = vld [vmem:[%s169 + $0x218] sm:$0xff]
        %v262 = vld [vmem:[%s169 + $0x220] sm:$0xff]
        %v263 = vld [vmem:[%s169 + $0x228] sm:$0xff]
        %v264 = vld [vmem:[%s169 + $0x230] sm:$0xff]
        %v265 = vld [vmem:[%s169 + $0x238] sm:$0xff]
        %v266 = vld [vmem:[%s169 + $0x240] sm:$0xff]
        %v267 = vld [vmem:[%s169 + $0x248] sm:$0xff]
        %v268 = vld [vmem:[%s169 + $0x250] sm:$0xff]
        %v269 = vld [vmem:[%s169 + $0x258] sm:$0xff]
        %v270 = vld [vmem:[%s169 + $0x260] sm:$0xff]
        %v271 = vld [vmem:[%s169 + $0x268] sm:$0xff]
        %v272 = vld [vmem:[%s169 + $0x270] sm:$0xff]
        %v273 = vld [vmem:[%s169 + $0x278] sm:$0xff]
        %v274 = vld [vmem:[%s169 + $0x280] sm:$0xff]
        %v275 = vld [vmem:[%s169 + $0x288] sm:$0xff]
        %v276 = vld [vmem:[%s169 + $0x290] sm:$0xff]
        %v277 = vld [vmem:[%s169 + $0x298] sm:$0xff]
        %v278 = vld [vmem:[%s169 + $0x2a0] sm:$0xff]
        %v279 = vld [vmem:[%s169 + $0x2a8] sm:$0xff]
        %v280 = vld [vmem:[%s169 + $0x2b0] sm:$0xff]
        %v281 = vld [vmem:[%s169 + $0x2b8] sm:$0xff]
        %v282 = vld [vmem:[%s169 + $0x2c0] sm:$0xff]
        %v283 = vld [vmem:[%s169 + $0x2c8] sm:$0xff]
        %v284 = vld [vmem:[%s169 + $0x2d0] sm:$0xff]
        %v285 = vld [vmem:[%s169 + $0x2d8] sm:$0xff]
        %v286 = vld [vmem:[%s169 + $0x2e0] sm:$0xff]
        %v287 = vld [vmem:[%s169 + $0x2e8] sm:$0xff]
        %v288 = vld [vmem:[%s169 + $0x2f0] sm:$0xff]
        %v289 = vld [vmem:[%s169 + $0x2f8] sm:$0xff]
        %v290 = vld [vmem:[%s169 + $0x300] sm:$0xff]
        %v291 = vld [vmem:[%s169 + $0x308] sm:$0xff]
        %v292 = vld [vmem:[%s169 + $0x310] sm:$0xff]
        %v293 = vld [vmem:[%s169 + $0x318] sm:$0xff]
        %v294 = vld [vmem:[%s169 + $0x320] sm:$0xff]
        %v295 = vld [vmem:[%s169 + $0x328] sm:$0xff]
        %v296 = vld [vmem:[%s169 + $0x330] sm:$0xff]
        %v297 = vld [vmem:[%s169 + $0x338] sm:$0xff]
        %v298 = vld [vmem:[%s169 + $0x340] sm:$0xff]
        %v299 = vld [vmem:[%s169 + $0x348] sm:$0xff]
        %v300 = vld [vmem:[%s169 + $0x350] sm:$0xff]
        %v301 = vld [vmem:[%s169 + $0x358] sm:$0xff]
        %v302 = vld [vmem:[%s169 + $0x360] sm:$0xff]
        %v303 = vld [vmem:[%s169 + $0x368] sm:$0xff]
        %v304 = vld [vmem:[%s169 + $0x370] sm:$0xff]
        %v305 = vld [vmem:[%s169 + $0x378] sm:$0xff]
        %v306 = vld [vmem:[%s169 + $0x380] sm:$0xff]
        %v307 = vld [vmem:[%s169 + $0x388] sm:$0xff]
        %v308 = vld [vmem:[%s169 + $0x390] sm:$0xff]
        %v309 = vld [vmem:[%s169 + $0x398] sm:$0xff]
        %v310 = vld [vmem:[%s169 + $0x3a0] sm:$0xff]
        %v311 = vld [vmem:[%s169 + $0x3a8] sm:$0xff]
        %v312 = vld [vmem:[%s169 + $0x3b0] sm:$0xff]
        %v313 = vld [vmem:[%s169 + $0x3b8] sm:$0xff]
        %v314 = vld [vmem:[%s169 + $0x3c0] sm:$0xff]
        %v315 = vld [vmem:[%s169 + $0x3c8] sm:$0xff]
        %v316 = vld [vmem:[%s169 + $0x3d0] sm:$0xff]
        %v317 = vld [vmem:[%s169 + $0x3d8] sm:$0xff]
        %v318 = vld [vmem:[%s169 + $0x3e0] sm:$0xff]
        %v319 = vld [vmem:[%s169 + $0x3e8] sm:$0xff]
        %v320 = vld [vmem:[%s169 + $0x3f0] sm:$0xff]
        %v321 = vld [vmem:[%s169 + $0x3f8] sm:$0xff]
        %v322 = vld [vmem:[%s169 + $0x400] sm:$0xff]
        %v323 = vld [vmem:[%s169 + $0x408] sm:$0xff]
        %v324 = vld [vmem:[%s169 + $0x410] sm:$0xff]
        %v325 = vld [vmem:[%s169 + $0x418] sm:$0xff]
        %v326 = vld [vmem:[%s169 + $0x420] sm:$0xff]
        %v327 = vld [vmem:[%s169 + $0x428] sm:$0xff]
        %v328 = vld [vmem:[%s169 + $0x430] sm:$0xff]
        %v329 = vld [vmem:[%s169 + $0x438] sm:$0xff]
        %v330 = vld [vmem:[%s169 + $0x440] sm:$0xff]
        %v331 = vld [vmem:[%s169 + $0x448] sm:$0xff]
        %v332 = vld [vmem:[%s169 + $0x450] sm:$0xff]
        %v333 = vld [vmem:[%s169 + $0x458] sm:$0xff]
        %v334 = vld [vmem:[%s169 + $0x460] sm:$0xff]
        %v335 = vld [vmem:[%s169 + $0x468] sm:$0xff]
        %v336 = vld [vmem:[%s169 + $0x470] sm:$0xff]
        %v337 = vld [vmem:[%s169 + $0x478] sm:$0xff]
        %v338 = vld [vmem:[%s169 + $0x480] sm:$0xff]
        %v339 = vld [vmem:[%s169 + $0x488] sm:$0xff]
        %v340 = vld [vmem:[%s169 + $0x490] sm:$0xff]
        %v341 = vld [vmem:[%s169 + $0x498] sm:$0xff]
        %v342 = vld [vmem:[%s169 + $0x4a0] sm:$0xff]
        %v343 = vld [vmem:[%s169 + $0x4a8] sm:$0xff]
        %v344 = vld [vmem:[%s169 + $0x4b0] sm:$0xff]
        %v345 = vld [vmem:[%s169 + $0x4b8] sm:$0xff]
        %v346 = vld [vmem:[%s169 + $0x4c0] sm:$0xff]
        %v347 = vld [vmem:[%s169 + $0x4c8] sm:$0xff]
        %v348 = vld [vmem:[%s169 + $0x4d0] sm:$0xff]
        %v349 = vld [vmem:[%s169 + $0x4d8] sm:$0xff]
        %v350 = vld [vmem:[%s169 + $0x4e0] sm:$0xff]
        %v351 = vld [vmem:[%s169 + $0x4e8] sm:$0xff]
        %v352 = vld [vmem:[%s169 + $0x4f0] sm:$0xff]
        %v353 = vld [vmem:[%s169 + $0x4f8] sm:$0xff]
        %v354 = vld [vmem:[%s169 + $0x500] sm:$0xff]
        %v355 = vld [vmem:[%s169 + $0x508] sm:$0xff]
        %v356 = vld [vmem:[%s169 + $0x510] sm:$0xff]
        %v357 = vld [vmem:[%s169 + $0x518] sm:$0xff]
        %v358 = vld [vmem:[%s169 + $0x520] sm:$0xff]
        %v359 = vld [vmem:[%s169 + $0x528] sm:$0xff]
        %v360 = vld [vmem:[%s169 + $0x530] sm:$0xff]
        %v361 = vld [vmem:[%s169 + $0x538] sm:$0xff]
        %v362 = vld [vmem:[%s169 + $0x540] sm:$0xff]
        %v363 = vld [vmem:[%s169 + $0x548] sm:$0xff]
        %v364 = vld [vmem:[%s169 + $0x550] sm:$0xff]
        %v365 = vld [vmem:[%s169 + $0x558] sm:$0xff]
        %v366 = vld [vmem:[%s169 + $0x560] sm:$0xff]
        %v367 = vld [vmem:[%s169 + $0x568] sm:$0xff]
        %v368 = vld [vmem:[%s169 + $0x570] sm:$0xff]
        %v369 = vld [vmem:[%s169 + $0x578] sm:$0xff]
        %v370 = vld [vmem:[%s169 + $0x580] sm:$0xff]
        %v371 = vld [vmem:[%s169 + $0x588] sm:$0xff]
        %v372 = vld [vmem:[%s169 + $0x590] sm:$0xff]
        %v373 = vld [vmem:[%s169 + $0x598] sm:$0xff]
        %v374 = vld [vmem:[%s169 + $0x5a0] sm:$0xff]
        %v375 = vld [vmem:[%s169 + $0x5a8] sm:$0xff]
        %v376 = vld [vmem:[%s169 + $0x5b0] sm:$0xff]
        %v377 = vld [vmem:[%s169 + $0x5b8] sm:$0xff]
        %v378 = vld [vmem:[%s169 + $0x5c0] sm:$0xff]
        %v379 = vld [vmem:[%s169 + $0x5c8] sm:$0xff]
        %v380 = vld [vmem:[%s169 + $0x5d0] sm:$0xff]
        %v381 = vld [vmem:[%s169 + $0x5d8] sm:$0xff]
        %v382 = vld [vmem:[%s169 + $0x5e0] sm:$0xff]
        %v383 = vld [vmem:[%s169 + $0x5e8] sm:$0xff]
        %v384 = vld [vmem:[%s169 + $0x5f0] sm:$0xff]
        %v385 = vld [vmem:[%s169 + $0x5f8] sm:$0xff]
        %v386 = vld [vmem:[%s169 + $0x600] sm:$0xff]
        %v387 = vld [vmem:[%s169 + $0x608] sm:$0xff]
        %v388 = vld [vmem:[%s169 + $0x610] sm:$0xff]
        %v389 = vld [vmem:[%s169 + $0x618] sm:$0xff]
        %v390 = vld [vmem:[%s169 + $0x620] sm:$0xff]
        %v391 = vld [vmem:[%s169 + $0x628] sm:$0xff]
        %v392 = vld [vmem:[%s169 + $0x630] sm:$0xff]
        %v393 = vld [vmem:[%s169 + $0x638] sm:$0xff]
        %v394 = vld [vmem:[%s169 + $0x640] sm:$0xff]
        %v395 = vld [vmem:[%s169 + $0x648] sm:$0xff]
        %v396 = vld [vmem:[%s169 + $0x650] sm:$0xff]
        %v397 = vld [vmem:[%s169 + $0x658] sm:$0xff]
        %v398 = vld [vmem:[%s169 + $0x660] sm:$0xff]
        %v399 = vld [vmem:[%s169 + $0x668] sm:$0xff]
        %v400 = vld [vmem:[%s169 + $0x670] sm:$0xff]
        %v401 = vld [vmem:[%s169 + $0x678] sm:$0xff]
        %v402 = vld [vmem:[%s169 + $0x680] sm:$0xff]
        %v403 = vld [vmem:[%s169 + $0x688] sm:$0xff]
        %v404 = vld [vmem:[%s169 + $0x690] sm:$0xff]
        %v405 = vld [vmem:[%s169 + $0x698] sm:$0xff]
        %v406 = vld [vmem:[%s169 + $0x6a0] sm:$0xff]
        %v407 = vld [vmem:[%s169 + $0x6a8] sm:$0xff]
        %v408 = vld [vmem:[%s169 + $0x6b0] sm:$0xff]
        %v409 = vld [vmem:[%s169 + $0x6b8] sm:$0xff]
        %v410 = vld [vmem:[%s169 + $0x6c0] sm:$0xff]
        %v411 = vld [vmem:[%s169 + $0x6c8] sm:$0xff]
        %v412 = vld [vmem:[%s169 + $0x6d0] sm:$0xff]
        %v413 = vld [vmem:[%s169 + $0x6d8] sm:$0xff]
        %v414 = vld [vmem:[%s169 + $0x6e0] sm:$0xff]
        %v415 = vld [vmem:[%s169 + $0x6e8] sm:$0xff]
        %v416 = vld [vmem:[%s169 + $0x6f0] sm:$0xff]
        %v417 = vld [vmem:[%s169 + $0x6f8] sm:$0xff]
        %v418 = vld [vmem:[%s169 + $0x700] sm:$0xff]
        %v419 = vld [vmem:[%s169 + $0x708] sm:$0xff]
        %v420 = vld [vmem:[%s169 + $0x710] sm:$0xff]
        %v421 = vld [vmem:[%s169 + $0x718] sm:$0xff]
        %v422 = vld [vmem:[%s169 + $0x720] sm:$0xff]
        %v423 = vld [vmem:[%s169 + $0x728] sm:$0xff]
        %v424 = vld [vmem:[%s169 + $0x730] sm:$0xff]
        %v425 = vld [vmem:[%s169 + $0x738] sm:$0xff]
        %v426 = vld [vmem:[%s169 + $0x740] sm:$0xff]
        %v427 = vld [vmem:[%s169 + $0x748] sm:$0xff]
        %v428 = vld [vmem:[%s169 + $0x750] sm:$0xff]
        %v429 = vld [vmem:[%s169 + $0x758] sm:$0xff]
        %v430 = vld [vmem:[%s169 + $0x760] sm:$0xff]
        %v431 = vld [vmem:[%s169 + $0x768] sm:$0xff]
        %v432 = vld [vmem:[%s169 + $0x770] sm:$0xff]
        %v433 = vld [vmem:[%s169 + $0x778] sm:$0xff]
        %v434 = vld [vmem:[%s169 + $0x780] sm:$0xff]
        %v435 = vld [vmem:[%s169 + $0x788] sm:$0xff]
        %v436 = vld [vmem:[%s169 + $0x790] sm:$0xff]
        %v437 = vld [vmem:[%s169 + $0x798] sm:$0xff]
        %v438 = vld [vmem:[%s169 + $0x7a0] sm:$0xff]
        %v439 = vld [vmem:[%s169 + $0x7a8] sm:$0xff]
        %v440 = vld [vmem:[%s169 + $0x7b0] sm:$0xff]
        %v441 = vld [vmem:[%s169 + $0x7b8] sm:$0xff]
        %v442 = vld [vmem:[%s169 + $0x7c0] sm:$0xff]
        %v443 = vld [vmem:[%s169 + $0x7c8] sm:$0xff]
        %v444 = vld [vmem:[%s169 + $0x7d0] sm:$0xff]
        %v445 = vld [vmem:[%s169 + $0x7d8] sm:$0xff]
        %v446 = vld [vmem:[%s169 + $0x7e0] sm:$0xff]
        %v447 = vld [vmem:[%s169 + $0x7e8] sm:$0xff]
        %v448 = vld [vmem:[%s169 + $0x7f0] sm:$0xff]
        %v449 = vld [vmem:[%s169 + $0x7f8] sm:$0xff]
        %s450 = sld [smem:[#allocation2]]
        %s451 = sld [smem:[#allocation3]]
        %v452 = vstv %s450
        %v453 = vmul.f32 %v452, %v194
        %v454 = vmul.f32 %v452, %v195
        %v455 = vmul.f32 %v452, %v196
        %v456 = vmul.f32 %v452, %v197
        %v457 = vmul.f32 %v452, %v198
        %v458 = vmul.f32 %v452, %v199
        %v459 = vmul.f32 %v452, %v200
        %v460 = vmul.f32 %v452, %v201
        %v461 = vmul.f32 %v452, %v202
        %v462 = vmul.f32 %v452, %v203
        %v463 = vmul.f32 %v452, %v204
        %v464 = vmul.f32 %v452, %v205
        %v465 = vmul.f32 %v452, %v206
        %v466 = vmul.f32 %v452, %v207
        %v467 = vmul.f32 %v452, %v208
        %v468 = vmul.f32 %v452, %v209
        %v469 = vmul.f32 %v452, %v210
        %v470 = vmul.f32 %v452, %v211
        %v471 = vmul.f32 %v452, %v212
        %v472 = vmul.f32 %v452, %v213
        %v473 = vmul.f32 %v452, %v214
        %v474 = vmul.f32 %v452, %v215
        %v475 = vmul.f32 %v452, %v216
        %v476 = vmul.f32 %v452, %v217
        %v477 = vmul.f32 %v452, %v218
        %v478 = vmul.f32 %v452, %v219
        %v479 = vmul.f32 %v452, %v220
        %v480 = vmul.f32 %v452, %v221
        %v481 = vmul.f32 %v452, %v222
        %v482 = vmul.f32 %v452, %v223
        %v483 = vmul.f32 %v452, %v224
        %v484 = vmul.f32 %v452, %v225
        %v485 = vmul.f32 %v452, %v226
        %v486 = vmul.f32 %v452, %v227
        %v487 = vmul.f32 %v452, %v228
        %v488 = vmul.f32 %v452, %v229
        %v489 = vmul.f32 %v452, %v230
        %v490 = vmul.f32 %v452, %v231
        %v491 = vmul.f32 %v452, %v232
        %v492 = vmul.f32 %v452, %v233
        %v493 = vmul.f32 %v452, %v234
        %v494 = vmul.f32 %v452, %v235
        %v495 = vmul.f32 %v452, %v236
        %v496 = vmul.f32 %v452, %v237
        %v497 = vmul.f32 %v452, %v238
        %v498 = vmul.f32 %v452, %v239
        %v499 = vmul.f32 %v452, %v240
        %v500 = vmul.f32 %v452, %v241
        %v501 = vmul.f32 %v452, %v242
        %v502 = vmul.f32 %v452, %v243
        %v503 = vmul.f32 %v452, %v244
        %v504 = vmul.f32 %v452, %v245
        %v505 = vmul.f32 %v452, %v246
        %v506 = vmul.f32 %v452, %v247
        %v507 = vmul.f32 %v452, %v248
        %v508 = vmul.f32 %v452, %v249
        %v509 = vmul.f32 %v452, %v250
        %v510 = vmul.f32 %v452, %v251
        %v511 = vmul.f32 %v452, %v252
        %v512 = vmul.f32 %v452, %v253
        %v513 = vmul.f32 %v452, %v254
        %v514 = vmul.f32 %v452, %v255
        %v515 = vmul.f32 %v452, %v256
        %v516 = vmul.f32 %v452, %v257
        %v517 = vmul.f32 %v452, %v258
        %v518 = vmul.f32 %v452, %v259
        %v519 = vmul.f32 %v452, %v260
        %v520 = vmul.f32 %v452, %v261
        %v521 = vmul.f32 %v452, %v262
        %v522 = vmul.f32 %v452, %v263
        %v523 = vmul.f32 %v452, %v264
        %v524 = vmul.f32 %v452, %v265
        %v525 = vmul.f32 %v452, %v266
        %v526 = vmul.f32 %v452, %v267
        %v527 = vmul.f32 %v452, %v268
        %v528 = vmul.f32 %v452, %v269
        %v529 = vmul.f32 %v452, %v270
        %v530 = vmul.f32 %v452, %v271
        %v531 = vmul.f32 %v452, %v272
        %v532 = vmul.f32 %v452, %v273
        %v533 = vmul.f32 %v452, %v274
        %v534 = vmul.f32 %v452, %v275
        %v535 = vmul.f32 %v452, %v276
        %v536 = vmul.f32 %v452, %v277
        %v537 = vmul.f32 %v452, %v278
        %v538 = vmul.f32 %v452, %v279
        %v539 = vmul.f32 %v452, %v280
        %v540 = vmul.f32 %v452, %v281
        %v541 = vmul.f32 %v452, %v282
        %v542 = vmul.f32 %v452, %v283
        %v543 = vmul.f32 %v452, %v284
        %v544 = vmul.f32 %v452, %v285
        %v545 = vmul.f32 %v452, %v286
        %v546 = vmul.f32 %v452, %v287
        %v547 = vmul.f32 %v452, %v288
        %v548 = vmul.f32 %v452, %v289
        %v549 = vmul.f32 %v452, %v290
        %v550 = vmul.f32 %v452, %v291
        %v551 = vmul.f32 %v452, %v292
        %v552 = vmul.f32 %v452, %v293
        %v553 = vmul.f32 %v452, %v294
        %v554 = vmul.f32 %v452, %v295
        %v555 = vmul.f32 %v452, %v296
        %v556 = vmul.f32 %v452, %v297
        %v557 = vmul.f32 %v452, %v298
        %v558 = vmul.f32 %v452, %v299
        %v559 = vmul.f32 %v452, %v300
        %v560 = vmul.f32 %v452, %v301
        %v561 = vmul.f32 %v452, %v302
        %v562 = vmul.f32 %v452, %v303
        %v563 = vmul.f32 %v452, %v304
        %v564 = vmul.f32 %v452, %v305
        %v565 = vmul.f32 %v452, %v306
        %v566 = vmul.f32 %v452, %v307
        %v567 = vmul.f32 %v452, %v308
        %v568 = vmul.f32 %v452, %v309
        %v569 = vmul.f32 %v452, %v310
        %v570 = vmul.f32 %v452, %v311
        %v571 = vmul.f32 %v452, %v312
        %v572 = vmul.f32 %v452, %v313
        %v573 = vmul.f32 %v452, %v314
        %v574 = vmul.f32 %v452, %v315
        %v575 = vmul.f32 %v452, %v316
        %v576 = vmul.f32 %v452, %v317
        %v577 = vmul.f32 %v452, %v318
        %v578 = vmul.f32 %v452, %v319
        %v579 = vmul.f32 %v452, %v320
        %v580 = vmul.f32 %v452, %v321
        %v581 = vmul.f32 %v452, %v322
        %v582 = vmul.f32 %v452, %v323
        %v583 = vmul.f32 %v452, %v324
        %v584 = vmul.f32 %v452, %v325
        %v585 = vmul.f32 %v452, %v326
        %v586 = vmul.f32 %v452, %v327
        %v587 = vmul.f32 %v452, %v328
        %v588 = vmul.f32 %v452, %v329
        %v589 = vmul.f32 %v452, %v330
        %v590 = vmul.f32 %v452, %v331
        %v591 = vmul.f32 %v452, %v332
        %v592 = vmul.f32 %v452, %v333
        %v593 = vmul.f32 %v452, %v334
        %v594 = vmul.f32 %v452, %v335
        %v595 = vmul.f32 %v452, %v336
        %v596 = vmul.f32 %v452, %v337
        %v597 = vmul.f32 %v452, %v338
        %v598 = vmul.f32 %v452, %v339
        %v599 = vmul.f32 %v452, %v340
        %v600 = vmul.f32 %v452, %v341
        %v601 = vmul.f32 %v452, %v342
        %v602 = vmul.f32 %v452, %v343
        %v603 = vmul.f32 %v452, %v344
        %v604 = vmul.f32 %v452, %v345
        %v605 = vmul.f32 %v452, %v346
        %v606 = vmul.f32 %v452, %v347
        %v607 = vmul.f32 %v452, %v348
        %v608 = vmul.f32 %v452, %v349
        %v609 = vmul.f32 %v452, %v350
        %v610 = vmul.f32 %v452, %v351
        %v611 = vmul.f32 %v452, %v352
        %v612 = vmul.f32 %v452, %v353
        %v613 = vmul.f32 %v452, %v354
        %v614 = vmul.f32 %v452, %v355
        %v615 = vmul.f32 %v452, %v356
        %v616 = vmul.f32 %v452, %v357
        %v617 = vmul.f32 %v452, %v358
        %v618 = vmul.f32 %v452, %v359
        %v619 = vmul.f32 %v452, %v360
        %v620 = vmul.f32 %v452, %v361
        %v621 = vmul.f32 %v452, %v362
        %v622 = vmul.f32 %v452, %v363
        %v623 = vmul.f32 %v452, %v364
        %v624 = vmul.f32 %v452, %v365
        %v625 = vmul.f32 %v452, %v366
        %v626 = vmul.f32 %v452, %v367
        %v627 = vmul.f32 %v452, %v368
        %v628 = vmul.f32 %v452, %v369
        %v629 = vmul.f32 %v452, %v370
        %v630 = vmul.f32 %v452, %v371
        %v631 = vmul.f32 %v452, %v372
        %v632 = vmul.f32 %v452, %v373
        %v633 = vmul.f32 %v452, %v374
        %v634 = vmul.f32 %v452, %v375
        %v635 = vmul.f32 %v452, %v376
        %v636 = vmul.f32 %v452, %v377
        %v637 = vmul.f32 %v452, %v378
        %v638 = vmul.f32 %v452, %v379
        %v639 = vmul.f32 %v452, %v380
        %v640 = vmul.f32 %v452, %v381
        %v641 = vmul.f32 %v452, %v382
        %v642 = vmul.f32 %v452, %v383
        %v643 = vmul.f32 %v452, %v384
        %v644 = vmul.f32 %v452, %v385
        %v645 = vmul.f32 %v452, %v386
        %v646 = vmul.f32 %v452, %v387
        %v647 = vmul.f32 %v452, %v388
        %v648 = vmul.f32 %v452, %v389
        %v649 = vmul.f32 %v452, %v390
        %v650 = vmul.f32 %v452, %v391
        %v651 = vmul.f32 %v452, %v392
        %v652 = vmul.f32 %v452, %v393
        %v653 = vmul.f32 %v452, %v394
        %v654 = vmul.f32 %v452, %v395
        %v655 = vmul.f32 %v452, %v396
        %v656 = vmul.f32 %v452, %v397
        %v657 = vmul.f32 %v452, %v398
        %v658 = vmul.f32 %v452, %v399
        %v659 = vmul.f32 %v452, %v400
        %v660 = vmul.f32 %v452, %v401
        %v661 = vmul.f32 %v452, %v402
        %v662 = vmul.f32 %v452, %v403
        %v663 = vmul.f32 %v452, %v404
        %v664 = vmul.f32 %v452, %v405
        %v665 = vmul.f32 %v452, %v406
        %v666 = vmul.f32 %v452, %v407
        %v667 = vmul.f32 %v452, %v408
        %v668 = vmul.f32 %v452, %v409
        %v669 = vmul.f32 %v452, %v410
        %v670 = vmul.f32 %v452, %v411
        %v671 = vmul.f32 %v452, %v412
        %v672 = vmul.f32 %v452, %v413
        %v673 = vmul.f32 %v452, %v414
        %v674 = vmul.f32 %v452, %v415
        %v675 = vmul.f32 %v452, %v416
        %v676 = vmul.f32 %v452, %v417
        %v677 = vmul.f32 %v452, %v418
        %v678 = vmul.f32 %v452, %v419
        %v679 = vmul.f32 %v452, %v420
        %v680 = vmul.f32 %v452, %v421
        %v681 = vmul.f32 %v452, %v422
        %v682 = vmul.f32 %v452, %v423
        %v683 = vmul.f32 %v452, %v424
        %v684 = vmul.f32 %v452, %v425
        %v685 = vmul.f32 %v452, %v426
        %v686 = vmul.f32 %v452, %v427
        %v687 = vmul.f32 %v452, %v428
        %v688 = vmul.f32 %v452, %v429
        %v689 = vmul.f32 %v452, %v430
        %v690 = vmul.f32 %v452, %v431
        %v691 = vmul.f32 %v452, %v432
        %v692 = vmul.f32 %v452, %v433
        %v693 = vmul.f32 %v452, %v434
        %v694 = vmul.f32 %v452, %v435
        %v695 = vmul.f32 %v452, %v436
        %v696 = vmul.f32 %v452, %v437
        %v697 = vmul.f32 %v452, %v438
        %v698 = vmul.f32 %v452, %v439
        %v699 = vmul.f32 %v452, %v440
        %v700 = vmul.f32 %v452, %v441
        %v701 = vmul.f32 %v452, %v442
        %v702 = vmul.f32 %v452, %v443
        %v703 = vmul.f32 %v452, %v444
        %v704 = vmul.f32 %v452, %v445
        %v705 = vmul.f32 %v452, %v446
        %v706 = vmul.f32 %v452, %v447
        %v707 = vmul.f32 %v452, %v448
        %v708 = vmul.f32 %v452, %v449
        %v709 = vstv %s451
        %v710 = vadd.f32 %v453, %v709
        %v711 = vadd.f32 %v454, %v709
        %v712 = vadd.f32 %v455, %v709
        %v713 = vadd.f32 %v456, %v709
        %v714 = vadd.f32 %v457, %v709
        %v715 = vadd.f32 %v458, %v709
        %v716 = vadd.f32 %v459, %v709
        %v717 = vadd.f32 %v460, %v709
        %v718 = vadd.f32 %v461, %v709
        %v719 = vadd.f32 %v462, %v709
        %v720 = vadd.f32 %v463, %v709
        %v721 = vadd.f32 %v464, %v709
        %v722 = vadd.f32 %v465, %v709
        %v723 = vadd.f32 %v466, %v709
        %v724 = vadd.f32 %v467, %v709
        %v725 = vadd.f32 %v468, %v709
        %v726 = vadd.f32 %v469, %v709
        %v727 = vadd.f32 %v470, %v709
        %v728 = vadd.f32 %v471, %v709
        %v729 = vadd.f32 %v472, %v709
        %v730 = vadd.f32 %v473, %v709
        %v731 = vadd.f32 %v474, %v709
        %v732 = vadd.f32 %v475, %v709
        %v733 = vadd.f32 %v476, %v709
        %v734 = vadd.f32 %v477, %v709
        %v735 = vadd.f32 %v478, %v709
        %v736 = vadd.f32 %v479, %v709
        %v737 = vadd.f32 %v480, %v709
        %v738 = vadd.f32 %v481, %v709
        %v739 = vadd.f32 %v482, %v709
        %v740 = vadd.f32 %v483, %v709
        %v741 = vadd.f32 %v484, %v709
        %v742 = vadd.f32 %v485, %v709
        %v743 = vadd.f32 %v486, %v709
        %v744 = vadd.f32 %v487, %v709
        %v745 = vadd.f32 %v488, %v709
        %v746 = vadd.f32 %v489, %v709
        %v747 = vadd.f32 %v490, %v709
        %v748 = vadd.f32 %v491, %v709
        %v749 = vadd.f32 %v492, %v709
        %v750 = vadd.f32 %v493, %v709
        %v751 = vadd.f32 %v494, %v709
        %v752 = vadd.f32 %v495, %v709
        %v753 = vadd.f32 %v496, %v709
        %v754 = vadd.f32 %v497, %v709
        %v755 = vadd.f32 %v498, %v709
        %v756 = vadd.f32 %v499, %v709
        %v757 = vadd.f32 %v500, %v709
        %v758 = vadd.f32 %v501, %v709
        %v759 = vadd.f32 %v502, %v709
        %v760 = vadd.f32 %v503, %v709
        %v761 = vadd.f32 %v504, %v709
        %v762 = vadd.f32 %v505, %v709
        %v763 = vadd.f32 %v506, %v709
        %v764 = vadd.f32 %v507, %v709
        %v765 = vadd.f32 %v508, %v709
        %v766 = vadd.f32 %v509, %v709
        %v767 = vadd.f32 %v510, %v709
        %v768 = vadd.f32 %v511, %v709
        %v769 = vadd.f32 %v512, %v709
        %v770 = vadd.f32 %v513, %v709
        %v771 = vadd.f32 %v514, %v709
        %v772 = vadd.f32 %v515, %v709
        %v773 = vadd.f32 %v516, %v709
        %v774 = vadd.f32 %v517, %v709
        %v775 = vadd.f32 %v518, %v709
        %v776 = vadd.f32 %v519, %v709
        %v777 = vadd.f32 %v520, %v709
        %v778 = vadd.f32 %v521, %v709
        %v779 = vadd.f32 %v522, %v709
        %v780 = vadd.f32 %v523, %v709
        %v781 = vadd.f32 %v524, %v709
        %v782 = vadd.f32 %v525, %v709
        %v783 = vadd.f32 %v526, %v709
        %v784 = vadd.f32 %v527, %v709
        %v785 = vadd.f32 %v528, %v709
        %v786 = vadd.f32 %v529, %v709
        %v787 = vadd.f32 %v530, %v709
        %v788 = vadd.f32 %v531, %v709
        %v789 = vadd.f32 %v532, %v709
        %v790 = vadd.f32 %v533, %v709
        %v791 = vadd.f32 %v534, %v709
        %v792 = vadd.f32 %v535, %v709
        %v793 = vadd.f32 %v536, %v709
        %v794 = vadd.f32 %v537, %v709
        %v795 = vadd.f32 %v538, %v709
        %v796 = vadd.f32 %v539, %v709
        %v797 = vadd.f32 %v540, %v709
        %v798 = vadd.f32 %v541, %v709
        %v799 = vadd.f32 %v542, %v709
        %v800 = vadd.f32 %v543, %v709
        %v801 = vadd.f32 %v544, %v709
        %v802 = vadd.f32 %v545, %v709
        %v803 = vadd.f32 %v546, %v709
        %v804 = vadd.f32 %v547, %v709
        %v805 = vadd.f32 %v548, %v709
        %v806 = vadd.f32 %v549, %v709
        %v807 = vadd.f32 %v550, %v709
        %v808 = vadd.f32 %v551, %v709
        %v809 = vadd.f32 %v552, %v709
        %v810 = vadd.f32 %v553, %v709
        %v811 = vadd.f32 %v554, %v709
        %v812 = vadd.f32 %v555, %v709
        %v813 = vadd.f32 %v556, %v709
        %v814 = vadd.f32 %v557, %v709
        %v815 = vadd.f32 %v558, %v709
        %v816 = vadd.f32 %v559, %v709
        %v817 = vadd.f32 %v560, %v709
        %v818 = vadd.f32 %v561, %v709
        %v819 = vadd.f32 %v562, %v709
        %v820 = vadd.f32 %v563, %v709
        %v821 = vadd.f32 %v564, %v709
        %v822 = vadd.f32 %v565, %v709
        %v823 = vadd.f32 %v566, %v709
        %v824 = vadd.f32 %v567, %v709
        %v825 = vadd.f32 %v568, %v709
        %v826 = vadd.f32 %v569, %v709
        %v827 = vadd.f32 %v570, %v709
        %v828 = vadd.f32 %v571, %v709
        %v829 = vadd.f32 %v572, %v709
        %v830 = vadd.f32 %v573, %v709
        %v831 = vadd.f32 %v574, %v709
        %v832 = vadd.f32 %v575, %v709
        %v833 = vadd.f32 %v576, %v709
        %v834 = vadd.f32 %v577, %v709
        %v835 = vadd.f32 %v578, %v709
        %v836 = vadd.f32 %v579, %v709
        %v837 = vadd.f32 %v580, %v709
        %v838 = vadd.f32 %v581, %v709
        %v839 = vadd.f32 %v582, %v709
        %v840 = vadd.f32 %v583, %v709
        %v841 = vadd.f32 %v584, %v709
        %v842 = vadd.f32 %v585, %v709
        %v843 = vadd.f32 %v586, %v709
        %v844 = vadd.f32 %v587, %v709
        %v845 = vadd.f32 %v588, %v709
        %v846 = vadd.f32 %v589, %v709
        %v847 = vadd.f32 %v590, %v709
        %v848 = vadd.f32 %v591, %v709
        %v849 = vadd.f32 %v592, %v709
        %v850 = vadd.f32 %v593, %v709
        %v851 = vadd.f32 %v594, %v709
        %v852 = vadd.f32 %v595, %v709
        %v853 = vadd.f32 %v596, %v709
        %v854 = vadd.f32 %v597, %v709
        %v855 = vadd.f32 %v598, %v709
        %v856 = vadd.f32 %v599, %v709
        %v857 = vadd.f32 %v600, %v709
        %v858 = vadd.f32 %v601, %v709
        %v859 = vadd.f32 %v602, %v709
        %v860 = vadd.f32 %v603, %v709
        %v861 = vadd.f32 %v604, %v709
        %v862 = vadd.f32 %v605, %v709
        %v863 = vadd.f32 %v606, %v709
        %v864 = vadd.f32 %v607, %v709
        %v865 = vadd.f32 %v608, %v709
        %v866 = vadd.f32 %v609, %v709
        %v867 = vadd.f32 %v610, %v709
        %v868 = vadd.f32 %v611, %v709
        %v869 = vadd.f32 %v612, %v709
        %v870 = vadd.f32 %v613, %v709
        %v871 = vadd.f32 %v614, %v709
        %v872 = vadd.f32 %v615, %v709
        %v873 = vadd.f32 %v616, %v709
        %v874 = vadd.f32 %v617, %v709
        %v875 = vadd.f32 %v618, %v709
        %v876 = vadd.f32 %v619, %v709
        %v877 = vadd.f32 %v620, %v709
        %v878 = vadd.f32 %v621, %v709
        %v879 = vadd.f32 %v622, %v709
        %v880 = vadd.f32 %v623, %v709
        %v881 = vadd.f32 %v624, %v709
        %v882 = vadd.f32 %v625, %v709
        %v883 = vadd.f32 %v626, %v709
        %v884 = vadd.f32 %v627, %v709
        %v885 = vadd.f32 %v628, %v709
        %v886 = vadd.f32 %v629, %v709
        %v887 = vadd.f32 %v630, %v709
        %v888 = vadd.f32 %v631, %v709
        %v889 = vadd.f32 %v632, %v709
        %v890 = vadd.f32 %v633, %v709
        %v891 = vadd.f32 %v634, %v709
        %v892 = vadd.f32 %v635, %v709
        %v893 = vadd.f32 %v636, %v709
        %v894 = vadd.f32 %v637, %v709
        %v895 = vadd.f32 %v638, %v709
        %v896 = vadd.f32 %v639, %v709
        %v897 = vadd.f32 %v640, %v709
        %v898 = vadd.f32 %v641, %v709
        %v899 = vadd.f32 %v642, %v709
        %v900 = vadd.f32 %v643, %v709
        %v901 = vadd.f32 %v644, %v709
        %v902 = vadd.f32 %v645, %v709
        %v903 = vadd.f32 %v646, %v709
        %v904 = vadd.f32 %v647, %v709
        %v905 = vadd.f32 %v648, %v709
        %v906 = vadd.f32 %v649, %v709
        %v907 = vadd.f32 %v650, %v709
        %v908 = vadd.f32 %v651, %v709
        %v909 = vadd.f32 %v652, %v709
        %v910 = vadd.f32 %v653, %v709
        %v911 = vadd.f32 %v654, %v709
        %v912 = vadd.f32 %v655, %v709
        %v913 = vadd.f32 %v656, %v709
        %v914 = vadd.f32 %v657, %v709
        %v915 = vadd.f32 %v658, %v709
        %v916 = vadd.f32 %v659, %v709
        %v917 = vadd.f32 %v660, %v709
        %v918 = vadd.f32 %v661, %v709
        %v919 = vadd.f32 %v662, %v709
        %v920 = vadd.f32 %v663, %v709
        %v921 = vadd.f32 %v664, %v709
        %v922 = vadd.f32 %v665, %v709
        %v923 = vadd.f32 %v666, %v709
        %v924 = vadd.f32 %v667, %v709
        %v925 = vadd.f32 %v668, %v709
        %v926 = vadd.f32 %v669, %v709
        %v927 = vadd.f32 %v670, %v709
        %v928 = vadd.f32 %v671, %v709
        %v929 = vadd.f32 %v672, %v709
        %v930 = vadd.f32 %v673, %v709
        %v931 = vadd.f32 %v674, %v709
        %v932 = vadd.f32 %v675, %v709
        %v933 = vadd.f32 %v676, %v709
        %v934 = vadd.f32 %v677, %v709
        %v935 = vadd.f32 %v678, %v709
        %v936 = vadd.f32 %v679, %v709
        %v937 = vadd.f32 %v680, %v709
        %v938 = vadd.f32 %v681, %v709
        %v939 = vadd.f32 %v682, %v709
        %v940 = vadd.f32 %v683, %v709
        %v941 = vadd.f32 %v684, %v709
        %v942 = vadd.f32 %v685, %v709
        %v943 = vadd.f32 %v686, %v709
        %v944 = vadd.f32 %v687, %v709
        %v945 = vadd.f32 %v688, %v709
        %v946 = vadd.f32 %v689, %v709
        %v947 = vadd.f32 %v690, %v709
        %v948 = vadd.f32 %v691, %v709
        %v949 = vadd.f32 %v692, %v709
        %v950 = vadd.f32 %v693, %v709
        %v951 = vadd.f32 %v694, %v709
        %v952 = vadd.f32 %v695, %v709
        %v953 = vadd.f32 %v696, %v709
        %v954 = vadd.f32 %v697, %v709
        %v955 = vadd.f32 %v698, %v709
        %v956 = vadd.f32 %v699, %v709
        %v957 = vadd.f32 %v700, %v709
        %v958 = vadd.f32 %v701, %v709
        %v959 = vadd.f32 %v702, %v709
        %v960 = vadd.f32 %v703, %v709
        %v961 = vadd.f32 %v704, %v709
        %v962 = vadd.f32 %v705, %v709
        %v963 = vadd.f32 %v706, %v709
        %v964 = vadd.f32 %v707, %v709
        %v965 = vadd.f32 %v708, %v709
        %966 = vst [vmem:[%s191] sm:$0xff] %v710
        %967 = vst [vmem:[%s191 + $0x8] sm:$0xff] %v711
        %968 = vst [vmem:[%s191 + $0x10] sm:$0xff] %v712
        %969 = vst [vmem:[%s191 + $0x18] sm:$0xff] %v713
        %970 = vst [vmem:[%s191 + $0x20] sm:$0xff] %v714
        %971 = vst [vmem:[%s191 + $0x28] sm:$0xff] %v715
        %972 = vst [vmem:[%s191 + $0x30] sm:$0xff] %v716
        %973 = vst [vmem:[%s191 + $0x38] sm:$0xff] %v717
        %974 = vst [vmem:[%s191 + $0x40] sm:$0xff] %v718
        %975 = vst [vmem:[%s191 + $0x48] sm:$0xff] %v719
        %976 = vst [vmem:[%s191 + $0x50] sm:$0xff] %v720
        %977 = vst [vmem:[%s191 + $0x58] sm:$0xff] %v721
        %978 = vst [vmem:[%s191 + $0x60] sm:$0xff] %v722
        %979 = vst [vmem:[%s191 + $0x68] sm:$0xff] %v723
        %980 = vst [vmem:[%s191 + $0x70] sm:$0xff] %v724
        %981 = vst [vmem:[%s191 + $0x78] sm:$0xff] %v725
        %982 = vst [vmem:[%s191 + $0x80] sm:$0xff] %v726
        %983 = vst [vmem:[%s191 + $0x88] sm:$0xff] %v727
        %984 = vst [vmem:[%s191 + $0x90] sm:$0xff] %v728
        %985 = vst [vmem:[%s191 + $0x98] sm:$0xff] %v729
        %986 = vst [vmem:[%s191 + $0xa0] sm:$0xff] %v730
        %987 = vst [vmem:[%s191 + $0xa8] sm:$0xff] %v731
        %988 = vst [vmem:[%s191 + $0xb0] sm:$0xff] %v732
        %989 = vst [vmem:[%s191 + $0xb8] sm:$0xff] %v733
        %990 = vst [vmem:[%s191 + $0xc0] sm:$0xff] %v734
        %991 = vst [vmem:[%s191 + $0xc8] sm:$0xff] %v735
        %992 = vst [vmem:[%s191 + $0xd0] sm:$0xff] %v736
        %993 = vst [vmem:[%s191 + $0xd8] sm:$0xff] %v737
        %994 = vst [vmem:[%s191 + $0xe0] sm:$0xff] %v738
        %995 = vst [vmem:[%s191 + $0xe8] sm:$0xff] %v739
        %996 = vst [vmem:[%s191 + $0xf0] sm:$0xff] %v740
        %997 = vst [vmem:[%s191 + $0xf8] sm:$0xff] %v741
        %998 = vst [vmem:[%s191 + $0x100] sm:$0xff] %v742
        %999 = vst [vmem:[%s191 + $0x108] sm:$0xff] %v743
        %1000 = vst [vmem:[%s191 + $0x110] sm:$0xff] %v744
        %1001 = vst [vmem:[%s191 + $0x118] sm:$0xff] %v745
        %1002 = vst [vmem:[%s191 + $0x120] sm:$0xff] %v746
        %1003 = vst [vmem:[%s191 + $0x128] sm:$0xff] %v747
        %1004 = vst [vmem:[%s191 + $0x130] sm:$0xff] %v748
        %1005 = vst [vmem:[%s191 + $0x138] sm:$0xff] %v749
        %1006 = vst [vmem:[%s191 + $0x140] sm:$0xff] %v750
        %1007 = vst [vmem:[%s191 + $0x148] sm:$0xff] %v751
        %1008 = vst [vmem:[%s191 + $0x150] sm:$0xff] %v752
        %1009 = vst [vmem:[%s191 + $0x158] sm:$0xff] %v753
        %1010 = vst [vmem:[%s191 + $0x160] sm:$0xff] %v754
        %1011 = vst [vmem:[%s191 + $0x168] sm:$0xff] %v755
        %1012 = vst [vmem:[%s191 + $0x170] sm:$0xff] %v756
        %1013 = vst [vmem:[%s191 + $0x178] sm:$0xff] %v757
        %1014 = vst [vmem:[%s191 + $0x180] sm:$0xff] %v758
        %1015 = vst [vmem:[%s191 + $0x188] sm:$0xff] %v759
        %1016 = vst [vmem:[%s191 + $0x190] sm:$0xff] %v760
        %1017 = vst [vmem:[%s191 + $0x198] sm:$0xff] %v761
        %1018 = vst [vmem:[%s191 + $0x1a0] sm:$0xff] %v762
        %1019 = vst [vmem:[%s191 + $0x1a8] sm:$0xff] %v763
        %1020 = vst [vmem:[%s191 + $0x1b0] sm:$0xff] %v764
        %1021 = vst [vmem:[%s191 + $0x1b8] sm:$0xff] %v765
        %1022 = vst [vmem:[%s191 + $0x1c0] sm:$0xff] %v766
        %1023 = vst [vmem:[%s191 + $0x1c8] sm:$0xff] %v767
        %1024 = vst [vmem:[%s191 + $0x1d0] sm:$0xff] %v768
        %1025 = vst [vmem:[%s191 + $0x1d8] sm:$0xff] %v769
        %1026 = vst [vmem:[%s191 + $0x1e0] sm:$0xff] %v770
        %1027 = vst [vmem:[%s191 + $0x1e8] sm:$0xff] %v771
        %1028 = vst [vmem:[%s191 + $0x1f0] sm:$0xff] %v772
        %1029 = vst [vmem:[%s191 + $0x1f8] sm:$0xff] %v773
        %1030 = vst [vmem:[%s191 + $0x200] sm:$0xff] %v774
        %1031 = vst [vmem:[%s191 + $0x208] sm:$0xff] %v775
        %1032 = vst [vmem:[%s191 + $0x210] sm:$0xff] %v776
        %1033 = vst [vmem:[%s191 + $0x218] sm:$0xff] %v777
        %1034 = vst [vmem:[%s191 + $0x220] sm:$0xff] %v778
        %1035 = vst [vmem:[%s191 + $0x228] sm:$0xff] %v779
        %1036 = vst [vmem:[%s191 + $0x230] sm:$0xff] %v780
        %1037 = vst [vmem:[%s191 + $0x238] sm:$0xff] %v781
        %1038 = vst [vmem:[%s191 + $0x240] sm:$0xff] %v782
        %1039 = vst [vmem:[%s191 + $0x248] sm:$0xff] %v783
        %1040 = vst [vmem:[%s191 + $0x250] sm:$0xff] %v784
        %1041 = vst [vmem:[%s191 + $0x258] sm:$0xff] %v785
        %1042 = vst [vmem:[%s191 + $0x260] sm:$0xff] %v786
        %1043 = vst [vmem:[%s191 + $0x268] sm:$0xff] %v787
        %1044 = vst [vmem:[%s191 + $0x270] sm:$0xff] %v788
        %1045 = vst [vmem:[%s191 + $0x278] sm:$0xff] %v789
        %1046 = vst [vmem:[%s191 + $0x280] sm:$0xff] %v790
        %1047 = vst [vmem:[%s191 + $0x288] sm:$0xff] %v791
        %1048 = vst [vmem:[%s191 + $0x290] sm:$0xff] %v792
        %1049 = vst [vmem:[%s191 + $0x298] sm:$0xff] %v793
        %1050 = vst [vmem:[%s191 + $0x2a0] sm:$0xff] %v794
        %1051 = vst [vmem:[%s191 + $0x2a8] sm:$0xff] %v795
        %1052 = vst [vmem:[%s191 + $0x2b0] sm:$0xff] %v796
        %1053 = vst [vmem:[%s191 + $0x2b8] sm:$0xff] %v797
        %1054 = vst [vmem:[%s191 + $0x2c0] sm:$0xff] %v798
        %1055 = vst [vmem:[%s191 + $0x2c8] sm:$0xff] %v799
        %1056 = vst [vmem:[%s191 + $0x2d0] sm:$0xff] %v800
        %1057 = vst [vmem:[%s191 + $0x2d8] sm:$0xff] %v801
        %1058 = vst [vmem:[%s191 + $0x2e0] sm:$0xff] %v802
        %1059 = vst [vmem:[%s191 + $0x2e8] sm:$0xff] %v803
        %1060 = vst [vmem:[%s191 + $0x2f0] sm:$0xff] %v804
        %1061 = vst [vmem:[%s191 + $0x2f8] sm:$0xff] %v805
        %1062 = vst [vmem:[%s191 + $0x300] sm:$0xff] %v806
        %1063 = vst [vmem:[%s191 + $0x308] sm:$0xff] %v807
        %1064 = vst [vmem:[%s191 + $0x310] sm:$0xff] %v808
        %1065 = vst [vmem:[%s191 + $0x318] sm:$0xff] %v809
        %1066 = vst [vmem:[%s191 + $0x320] sm:$0xff] %v810
        %1067 = vst [vmem:[%s191 + $0x328] sm:$0xff] %v811
        %1068 = vst [vmem:[%s191 + $0x330] sm:$0xff] %v812
        %1069 = vst [vmem:[%s191 + $0x338] sm:$0xff] %v813
        %1070 = vst [vmem:[%s191 + $0x340] sm:$0xff] %v814
        %1071 = vst [vmem:[%s191 + $0x348] sm:$0xff] %v815
        %1072 = vst [vmem:[%s191 + $0x350] sm:$0xff] %v816
        %1073 = vst [vmem:[%s191 + $0x358] sm:$0xff] %v817
        %1074 = vst [vmem:[%s191 + $0x360] sm:$0xff] %v818
        %1075 = vst [vmem:[%s191 + $0x368] sm:$0xff] %v819
        %1076 = vst [vmem:[%s191 + $0x370] sm:$0xff] %v820
        %1077 = vst [vmem:[%s191 + $0x378] sm:$0xff] %v821
        %1078 = vst [vmem:[%s191 + $0x380] sm:$0xff] %v822
        %1079 = vst [vmem:[%s191 + $0x388] sm:$0xff] %v823
        %1080 = vst [vmem:[%s191 + $0x390] sm:$0xff] %v824
        %1081 = vst [vmem:[%s191 + $0x398] sm:$0xff] %v825
        %1082 = vst [vmem:[%s191 + $0x3a0] sm:$0xff] %v826
        %1083 = vst [vmem:[%s191 + $0x3a8] sm:$0xff] %v827
        %1084 = vst [vmem:[%s191 + $0x3b0] sm:$0xff] %v828
        %1085 = vst [vmem:[%s191 + $0x3b8] sm:$0xff] %v829
        %1086 = vst [vmem:[%s191 + $0x3c0] sm:$0xff] %v830
        %1087 = vst [vmem:[%s191 + $0x3c8] sm:$0xff] %v831
        %1088 = vst [vmem:[%s191 + $0x3d0] sm:$0xff] %v832
        %1089 = vst [vmem:[%s191 + $0x3d8] sm:$0xff] %v833
        %1090 = vst [vmem:[%s191 + $0x3e0] sm:$0xff] %v834
        %1091 = vst [vmem:[%s191 + $0x3e8] sm:$0xff] %v835
        %1092 = vst [vmem:[%s191 + $0x3f0] sm:$0xff] %v836
        %1093 = vst [vmem:[%s191 + $0x3f8] sm:$0xff] %v837
        %1094 = vst [vmem:[%s191 + $0x400] sm:$0xff] %v838
        %1095 = vst [vmem:[%s191 + $0x408] sm:$0xff] %v839
        %1096 = vst [vmem:[%s191 + $0x410] sm:$0xff] %v840
        %1097 = vst [vmem:[%s191 + $0x418] sm:$0xff] %v841
        %1098 = vst [vmem:[%s191 + $0x420] sm:$0xff] %v842
        %1099 = vst [vmem:[%s191 + $0x428] sm:$0xff] %v843
        %1100 = vst [vmem:[%s191 + $0x430] sm:$0xff] %v844
        %1101 = vst [vmem:[%s191 + $0x438] sm:$0xff] %v845
        %1102 = vst [vmem:[%s191 + $0x440] sm:$0xff] %v846
        %1103 = vst [vmem:[%s191 + $0x448] sm:$0xff] %v847
        %1104 = vst [vmem:[%s191 + $0x450] sm:$0xff] %v848
        %1105 = vst [vmem:[%s191 + $0x458] sm:$0xff] %v849
        %1106 = vst [vmem:[%s191 + $0x460] sm:$0xff] %v850
        %1107 = vst [vmem:[%s191 + $0x468] sm:$0xff] %v851
        %1108 = vst [vmem:[%s191 + $0x470] sm:$0xff] %v852
        %1109 = vst [vmem:[%s191 + $0x478] sm:$0xff] %v853
        %1110 = vst [vmem:[%s191 + $0x480] sm:$0xff] %v854
        %1111 = vst [vmem:[%s191 + $0x488] sm:$0xff] %v855
        %1112 = vst [vmem:[%s191 + $0x490] sm:$0xff] %v856
        %1113 = vst [vmem:[%s191 + $0x498] sm:$0xff] %v857
        %1114 = vst [vmem:[%s191 + $0x4a0] sm:$0xff] %v858
        %1115 = vst [vmem:[%s191 + $0x4a8] sm:$0xff] %v859
        %1116 = vst [vmem:[%s191 + $0x4b0] sm:$0xff] %v860
        %1117 = vst [vmem:[%s191 + $0x4b8] sm:$0xff] %v861
        %1118 = vst [vmem:[%s191 + $0x4c0] sm:$0xff] %v862
        %1119 = vst [vmem:[%s191 + $0x4c8] sm:$0xff] %v863
        %1120 = vst [vmem:[%s191 + $0x4d0] sm:$0xff] %v864
        %1121 = vst [vmem:[%s191 + $0x4d8] sm:$0xff] %v865
        %1122 = vst [vmem:[%s191 + $0x4e0] sm:$0xff] %v866
        %1123 = vst [vmem:[%s191 + $0x4e8] sm:$0xff] %v867
        %1124 = vst [vmem:[%s191 + $0x4f0] sm:$0xff] %v868
        %1125 = vst [vmem:[%s191 + $0x4f8] sm:$0xff] %v869
        %1126 = vst [vmem:[%s191 + $0x500] sm:$0xff] %v870
        %1127 = vst [vmem:[%s191 + $0x508] sm:$0xff] %v871
        %1128 = vst [vmem:[%s191 + $0x510] sm:$0xff] %v872
        %1129 = vst [vmem:[%s191 + $0x518] sm:$0xff] %v873
        %1130 = vst [vmem:[%s191 + $0x520] sm:$0xff] %v874
        %1131 = vst [vmem:[%s191 + $0x528] sm:$0xff] %v875
        %1132 = vst [vmem:[%s191 + $0x530] sm:$0xff] %v876
        %1133 = vst [vmem:[%s191 + $0x538] sm:$0xff] %v877
        %1134 = vst [vmem:[%s191 + $0x540] sm:$0xff] %v878
        %1135 = vst [vmem:[%s191 + $0x548] sm:$0xff] %v879
        %1136 = vst [vmem:[%s191 + $0x550] sm:$0xff] %v880
        %1137 = vst [vmem:[%s191 + $0x558] sm:$0xff] %v881
        %1138 = vst [vmem:[%s191 + $0x560] sm:$0xff] %v882
        %1139 = vst [vmem:[%s191 + $0x568] sm:$0xff] %v883
        %1140 = vst [vmem:[%s191 + $0x570] sm:$0xff] %v884
        %1141 = vst [vmem:[%s191 + $0x578] sm:$0xff] %v885
        %1142 = vst [vmem:[%s191 + $0x580] sm:$0xff] %v886
        %1143 = vst [vmem:[%s191 + $0x588] sm:$0xff] %v887
        %1144 = vst [vmem:[%s191 + $0x590] sm:$0xff] %v888
        %1145 = vst [vmem:[%s191 + $0x598] sm:$0xff] %v889
        %1146 = vst [vmem:[%s191 + $0x5a0] sm:$0xff] %v890
        %1147 = vst [vmem:[%s191 + $0x5a8] sm:$0xff] %v891
        %1148 = vst [vmem:[%s191 + $0x5b0] sm:$0xff] %v892
        %1149 = vst [vmem:[%s191 + $0x5b8] sm:$0xff] %v893
        %1150 = vst [vmem:[%s191 + $0x5c0] sm:$0xff] %v894
        %1151 = vst [vmem:[%s191 + $0x5c8] sm:$0xff] %v895
        %1152 = vst [vmem:[%s191 + $0x5d0] sm:$0xff] %v896
        %1153 = vst [vmem:[%s191 + $0x5d8] sm:$0xff] %v897
        %1154 = vst [vmem:[%s191 + $0x5e0] sm:$0xff] %v898
        %1155 = vst [vmem:[%s191 + $0x5e8] sm:$0xff] %v899
        %1156 = vst [vmem:[%s191 + $0x5f0] sm:$0xff] %v900
        %1157 = vst [vmem:[%s191 + $0x5f8] sm:$0xff] %v901
        %1158 = vst [vmem:[%s191 + $0x600] sm:$0xff] %v902
        %1159 = vst [vmem:[%s191 + $0x608] sm:$0xff] %v903
        %1160 = vst [vmem:[%s191 + $0x610] sm:$0xff] %v904
        %1161 = vst [vmem:[%s191 + $0x618] sm:$0xff] %v905
        %1162 = vst [vmem:[%s191 + $0x620] sm:$0xff] %v906
        %1163 = vst [vmem:[%s191 + $0x628] sm:$0xff] %v907
        %1164 = vst [vmem:[%s191 + $0x630] sm:$0xff] %v908
        %1165 = vst [vmem:[%s191 + $0x638] sm:$0xff] %v909
        %1166 = vst [vmem:[%s191 + $0x640] sm:$0xff] %v910
        %1167 = vst [vmem:[%s191 + $0x648] sm:$0xff] %v911
        %1168 = vst [vmem:[%s191 + $0x650] sm:$0xff] %v912
        %1169 = vst [vmem:[%s191 + $0x658] sm:$0xff] %v913
        %1170 = vst [vmem:[%s191 + $0x660] sm:$0xff] %v914
        %1171 = vst [vmem:[%s191 + $0x668] sm:$0xff] %v915
        %1172 = vst [vmem:[%s191 + $0x670] sm:$0xff] %v916
        %1173 = vst [vmem:[%s191 + $0x678] sm:$0xff] %v917
        %1174 = vst [vmem:[%s191 + $0x680] sm:$0xff] %v918
        %1175 = vst [vmem:[%s191 + $0x688] sm:$0xff] %v919
        %1176 = vst [vmem:[%s191 + $0x690] sm:$0xff] %v920
        %1177 = vst [vmem:[%s191 + $0x698] sm:$0xff] %v921
        %1178 = vst [vmem:[%s191 + $0x6a0] sm:$0xff] %v922
        %1179 = vst [vmem:[%s191 + $0x6a8] sm:$0xff] %v923
        %1180 = vst [vmem:[%s191 + $0x6b0] sm:$0xff] %v924
        %1181 = vst [vmem:[%s191 + $0x6b8] sm:$0xff] %v925
        %1182 = vst [vmem:[%s191 + $0x6c0] sm:$0xff] %v926
        %1183 = vst [vmem:[%s191 + $0x6c8] sm:$0xff] %v927
        %1184 = vst [vmem:[%s191 + $0x6d0] sm:$0xff] %v928
        %1185 = vst [vmem:[%s191 + $0x6d8] sm:$0xff] %v929
        %1186 = vst [vmem:[%s191 + $0x6e0] sm:$0xff] %v930
        %1187 = vst [vmem:[%s191 + $0x6e8] sm:$0xff] %v931
        %1188 = vst [vmem:[%s191 + $0x6f0] sm:$0xff] %v932
        %1189 = vst [vmem:[%s191 + $0x6f8] sm:$0xff] %v933
        %1190 = vst [vmem:[%s191 + $0x700] sm:$0xff] %v934
        %1191 = vst [vmem:[%s191 + $0x708] sm:$0xff] %v935
        %1192 = vst [vmem:[%s191 + $0x710] sm:$0xff] %v936
        %1193 = vst [vmem:[%s191 + $0x718] sm:$0xff] %v937
        %1194 = vst [vmem:[%s191 + $0x720] sm:$0xff] %v938
        %1195 = vst [vmem:[%s191 + $0x728] sm:$0xff] %v939
        %1196 = vst [vmem:[%s191 + $0x730] sm:$0xff] %v940
        %1197 = vst [vmem:[%s191 + $0x738] sm:$0xff] %v941
        %1198 = vst [vmem:[%s191 + $0x740] sm:$0xff] %v942
        %1199 = vst [vmem:[%s191 + $0x748] sm:$0xff] %v943
        %1200 = vst [vmem:[%s191 + $0x750] sm:$0xff] %v944
        %1201 = vst [vmem:[%s191 + $0x758] sm:$0xff] %v945
        %1202 = vst [vmem:[%s191 + $0x760] sm:$0xff] %v946
        %1203 = vst [vmem:[%s191 + $0x768] sm:$0xff] %v947
        %1204 = vst [vmem:[%s191 + $0x770] sm:$0xff] %v948
        %1205 = vst [vmem:[%s191 + $0x778] sm:$0xff] %v949
        %1206 = vst [vmem:[%s191 + $0x780] sm:$0xff] %v950
        %1207 = vst [vmem:[%s191 + $0x788] sm:$0xff] %v951
        %1208 = vst [vmem:[%s191 + $0x790] sm:$0xff] %v952
        %1209 = vst [vmem:[%s191 + $0x798] sm:$0xff] %v953
        %1210 = vst [vmem:[%s191 + $0x7a0] sm:$0xff] %v954
        %1211 = vst [vmem:[%s191 + $0x7a8] sm:$0xff] %v955
        %1212 = vst [vmem:[%s191 + $0x7b0] sm:$0xff] %v956
        %1213 = vst [vmem:[%s191 + $0x7b8] sm:$0xff] %v957
        %1214 = vst [vmem:[%s191 + $0x7c0] sm:$0xff] %v958
        %1215 = vst [vmem:[%s191 + $0x7c8] sm:$0xff] %v959
        %1216 = vst [vmem:[%s191 + $0x7d0] sm:$0xff] %v960
        %1217 = vst [vmem:[%s191 + $0x7d8] sm:$0xff] %v961
        %1218 = vst [vmem:[%s191 + $0x7e0] sm:$0xff] %v962
        %1219 = vst [vmem:[%s191 + $0x7e8] sm:$0xff] %v963
        %1220 = vst [vmem:[%s191 + $0x7f0] sm:$0xff] %v964
        %1221 = vst [vmem:[%s191 + $0x7f8] sm:$0xff] %v965
        %s1222 = sand.u32 %s98, 1
        %s1223 = scalar_lea.sflag [#allocation6], %s1222
        %s1224 = sand.u32 %s98, 1
        %s1225 = smul.addr %s1224, 2048
        %s1226 = scalar_lea.vmem [#allocation7], %s1225
        // Predicated region
        $region37: #{tpu_custom_call.1} parent=31 // pred_check
          %p1227 = pneg %p108
        $region38: #{tpu_custom_call.1} parent=31 // pred_check_branch
          %1229 = sbr.rel (%p1227) target = $region40
        $region39: #{tpu_custom_call.1} parent=31 // pred_region
          %s1230 = smul.u32 128, %s22
          %s1232 = ssub.s32 32768, 32768
          %1233 = vsyncadd %s1223, %s1232
          %s1234 = smul.addr %s1230, 2
          %s1235 = smul.addr %s1234, 128
          %s1236 = scalar_lea.hbm %s3, %s1235
          %s1237 = sshll.u32 %s1226, 4
          %s1238 = int_to_ptr.vmem [resolvable:$true] %s1237
          %1243 = dma.vmem_to_hbm [thread:$0]  %s1238, 32768, %s1236, %s1223, 256, 256, 16
        $region40: #{tpu_custom_call.1} parent=31 // pred_fallthru
          _
      $region32: #{tpu_custom_call.1} parent=5 // pred_fallthru
        _
      %p1244 = scmp.le.s32.totalorder 2, %s17
      // Predicated region
      $region41: #{tpu_custom_call.1} parent=5 // pred_check
        %p1245 = pneg %p1244
      $region42: #{tpu_custom_call.1} parent=5 // pred_check_branch
        %1247 = sbr.rel (%p1245) target = $region44
      $region43: #{tpu_custom_call.1} parent=5 // pred_region
        %s1248 = ssub.s32 %s17, 2
        // Predicated region
        $region45: #{tpu_custom_call.1} parent=43 // pred_check
          %p1249 = pneg %p114
        $region46: #{tpu_custom_call.1} parent=43 // pred_check_branch
          %1251 = sbr.rel (%p1249) target = $region48
        $region47: #{tpu_custom_call.1} parent=43 // pred_region
          %s1252 = sand.u32 %s99, 1
          %s1253 = scalar_lea.sflag [#allocation6], %s1252
          %s1254 = sand.u32 %s99, 1
          %s1255 = smul.addr %s1254, 2048
          %s1256 = scalar_lea.vmem [#allocation7], %s1255
          %1257 = dma.done %s1253, 32768
        $region48: #{tpu_custom_call.1} parent=43 // pred_fallthru
          _
      $region44: #{tpu_custom_call.1} parent=5 // pred_fallthru
        _
    $region6: #{tpu_custom_call.1} parent=1 // loop_footer
      %s21 = sadd.s32 1, %s17
    $region7: #{tpu_custom_call.1} parent=1 // loop_footer_branch
      %16 = sbr.rel target = $region3
    $region8: #{tpu_custom_call.1} parent=1 // loop_exit
      _
    %1258 = vsyncpa [#allocation5], 1
    %s1259 = scalar_lea.sflag [#allocation5], 1
    %1260 = vsyncpa %s1259, 1
    %1261 = vsyncpa [#allocation6], 1
    %s1262 = scalar_lea.sflag [#allocation6], 1
    %1263 = vsyncpa %s1262, 1

</llo_original>
